<compile_context>
chip_gen: v7x
topology: tpu7x:2x2x1
jax: 0.10.0
libtpu: 0.0.40
codegen_flags: <defaults>
</compile_context>

<pallas_src>
import functools

import jax
import jax.numpy as jnp
from jax.experimental import pallas as pl
from jax.experimental.pallas import tpu as pltpu

LANE = 128
SUBLANE = 8


def _round_up(x, m):
    return ((x + m - 1) // m) * m


def _default_tb(B):
    """Batch tile size: sublane-aligned, >=2 tiles for B>8 (v7x TC sharding),
    capped at 1024 rows (overhead-bound kernel -> fewer, larger steps)."""
    if B <= SUBLANE:
        return SUBLANE
    return min(_round_up(pl.cdiv(B, 2), SUBLANE), 1024)


def bert_classifier_kernel(cls_ref, w1_ref, b1_ref, w2_ref, b2_ref, o_ref):
    """Fused 2-layer MLP head on the CLS activations.

    cls_ref: (tb, 768) f32  (CLS columns of the flattened hidden state)
    w1_ref : (768, 128) bf16 (cols 50..127 zero)     b1_ref: (1, 128) f32
    w2_ref : (128, 128) bf16 (only [:50, :2] nonzero) b2_ref: (1, 128) f32
    o_ref  : (tb, 128) f32   (lanes >= 2 are zero-ish padding, sliced off)
    """
    # Cast fused into the kernel: HBM only ever supplies the raw f32 CLS rows.
    x = cls_ref[...].astype(jnp.bfloat16)
    # Linear(768 -> 50): bf16 operands on the MXU, f32 accumulation.
    h = jnp.dot(x, w1_ref[...], preferred_element_type=jnp.float32)
    h = jax.nn.sigmoid(h + b1_ref[...])            # EUP sigmoid in f32
    # Linear(50 -> 2): bf16 operands, f32 accumulation.  Padded lanes of h are
    # 0.5 but the matching rows of w2 are zero, so they contribute nothing.
    logits = jnp.dot(h.astype(jnp.bfloat16), w2_ref[...],
                     preferred_element_type=jnp.float32)
    # Lane-dense (tb, 128) store -- no masked partial stores.
    o_ref[...] = (logits + b2_ref[...]).astype(o_ref.dtype)


def prepare_classifier_params(w1, b1, w2, b2):
    """One-time (model-load) padding/casting of the classifier parameters.

    Keep this OUT of the per-call path: it is ~0.5 MiB of HBM traffic and a
    handful of XLA ops that would otherwise run on every forward call.
    """
    H, HID = w1.shape
    OUT = w2.shape[1]
    HID_P = _round_up(HID, LANE)   # 50 -> 128
    OUT_P = _round_up(OUT, LANE)   # 2  -> 128
    w1p = jnp.zeros((H, HID_P), jnp.bfloat16).at[:, :HID].set(
        w1.astype(jnp.bfloat16))
    b1p = jnp.zeros((1, HID_P), jnp.float32).at[:, :HID].set(
        b1.reshape(1, HID).astype(jnp.float32))
    w2p = jnp.zeros((HID_P, OUT_P), jnp.bfloat16).at[:HID, :OUT].set(
        w2.astype(jnp.bfloat16))
    b2p = jnp.zeros((1, OUT_P), jnp.float32).at[:, :OUT].set(
        b2.reshape(1, OUT).astype(jnp.float32))
    return (w1p, b1p, w2p, b2p), OUT


@functools.partial(jax.jit, static_argnames=("out_dim", "tb"))
def bert_classifier_head(last_hidden_state, w1p, b1p, w2p, b2p, *,
                         out_dim, tb=None):
    """logits = Sigmoid(cls @ w1 + b1) @ w2 + b2, cls = last_hidden_state[:,0,:]."""
    B, S, H = last_hidden_state.shape
    HID_P = w1p.shape[1]
    OUT_P = w2p.shape[1]

    # Free reshape (contiguous row-major merge): the CLS token of row b is
    # exactly columns [0, H) of flat[b].  The BlockSpec below fetches only
    # those columns, so the full (B, S, H) tensor never enters VMEM.
    flat = last_hidden_state.reshape(B, S * H)

    if tb is None:
        tb = _default_tb(B)
    tb = _round_up(tb, SUBLANE)

    grid = (pl.cdiv(B, tb),)   # ragged last block handled by Pallas masking
    out = pl.pallas_call(
        bert_classifier_kernel,
        out_shape=jax.ShapeDtypeStruct((B, OUT_P), jnp.float32),
        grid_spec=pltpu.PrefetchScalarGridSpec(
            num_scalar_prefetch=0,
            grid=grid,
            in_specs=[
                # CLS batch tile: rows [i*tb,(i+1)*tb), first H lanes only.
                pl.BlockSpec((tb, H), lambda i: (i, 0)),
                pl.BlockSpec((H, HID_P), lambda i: (0, 0)),      # w1 (resident)
                pl.BlockSpec((1, HID_P), lambda i: (0, 0)),      # b1 (resident)
                pl.BlockSpec((HID_P, OUT_P), lambda i: (0, 0)),  # w2 (resident)
                pl.BlockSpec((1, OUT_P), lambda i: (0, 0)),      # b2 (resident)
            ],
            out_specs=pl.BlockSpec((tb, OUT_P), lambda i: (i, 0)),
        ),
        compiler_params=pltpu.CompilerParams(
            dimension_semantics=("parallel",),
            vmem_limit_bytes=32 * 1024 * 1024,
        ),
    )(flat, w1p, b1p, w2p, b2p)

    # Strip lane padding (batch is not padded -- grid is cdiv-ragged).
    return out[:, :out_dim]


def synthetic_bert_last_hidden_state(input_ids, attention_mask, embed_table):
    """Deterministic stand-in for the external BERT backbone (plain-JAX glue).

    Returns a (B, S, 768) float32 tensor analogous to outputs[0].
    """
    emb = embed_table[input_ids]                           # (B, S, 768)
    emb = emb * attention_mask[..., None].astype(emb.dtype)
    return emb


if __name__ == "__main__":
    key = jax.random.PRNGKey(0)
    k_emb, k_ids, k_w1, k_b1, k_w2, k_b2 = jax.random.split(key, 6)

    # Small shapes consistent with the module's forward.
    B, S = 16, 8
    INPUT_SIZE, HIDDEN_SIZE, OUTPUT_SIZE = 768, 50, 2
    VOCAB = 100

    # Synthetic "BERT" inputs.
    input_ids = jax.random.randint(k_ids, (B, S), 0, VOCAB, dtype=jnp.int32)
    attention_mask = jnp.ones((B, S), dtype=jnp.int32)
    embed_table = jax.random.normal(k_emb, (VOCAB, INPUT_SIZE), jnp.float32) * 0.02

    # Classifier parameters (same shapes as the nn.Linear layers).
    w1 = jax.random.normal(k_w1, (INPUT_SIZE, HIDDEN_SIZE), jnp.float32) * 0.02
    b1 = jax.random.normal(k_b1, (1, HIDDEN_SIZE), jnp.float32) * 0.02
    w2 = jax.random.normal(k_w2, (HIDDEN_SIZE, OUTPUT_SIZE), jnp.float32) * 0.02
    b2 = jax.random.normal(k_b2, (1, OUTPUT_SIZE), jnp.float32) * 0.02

    # One-time parameter preparation (model-load time, not per call).
    (w1p, b1p, w2p, b2p), out_dim = prepare_classifier_params(w1, b1, w2, b2)

    # "bert(input_ids, attention_mask)" stand-in (glue, plain JAX).
    last_hidden_state = synthetic_bert_last_hidden_state(
        input_ids, attention_mask, embed_table)

    # tb=8 -> grid of 2 batch tiles (exercises the parallel batch axis).
    logits = bert_classifier_head(last_hidden_state, w1p, b1p, w2p, b2p,
                                  out_dim=out_dim, tb=8)
    logits = jax.block_until_ready(logits)

    # Reference check (pure JAX, f32).  Both GEMMs run bf16-in/f32-acc on the
    # MXU => loosened tolerance (observed drift ~1e-3 at these scales).
    cls = last_hidden_state[:, 0, :]
    ref = jax.nn.sigmoid(cls @ w1 + b1) @ w2 + b2
    assert logits.shape == (B, OUTPUT_SIZE)
    assert jnp.allclose(logits, ref, atol=1e-2, rtol=1e-2), (
        f"max abs err {jnp.max(jnp.abs(logits - ref))}")

    print("KERNEL_OK")
</pallas_src>

<mosaic_0001>
module attributes {stable_mosaic.version = 11 : i64} {
  func.func @bert_classifier_kernel(%arg0: i32, %arg1: memref<8x768xf32, #tpu.memory_space<vmem>>, %arg2: memref<768x128xbf16, #tpu.memory_space<vmem>>, %arg3: memref<1x128xf32, #tpu.memory_space<vmem>>, %arg4: memref<128x128xbf16, #tpu.memory_space<vmem>>, %arg5: memref<1x128xf32, #tpu.memory_space<vmem>>, %arg6: memref<8x128xf32, #tpu.memory_space<vmem>>) attributes {dimension_semantics = [#tpu.dimension_semantics<parallel>], iteration_bounds = array<i64: 2>, scalar_prefetch = 0 : i64, scratch_operands = 0 : i64, tpu.core_type = #tpu.core_type<tc>, window_params = [{transform_indices = @transform_0, window_bounds = array<i64: 8, 768>}, {pipeline_mode = #tpu.pipeline_mode<synchronous>, transform_indices = @transform_1, window_bounds = array<i64: 768, 128>}, {pipeline_mode = #tpu.pipeline_mode<synchronous>, transform_indices = @transform_2, window_bounds = array<i64: 1, 128>}, {pipeline_mode = #tpu.pipeline_mode<synchronous>, transform_indices = @transform_3, window_bounds = array<i64: 128, 128>}, {pipeline_mode = #tpu.pipeline_mode<synchronous>, transform_indices = @transform_4, window_bounds = array<i64: 1, 128>}, {transform_indices = @transform_5, window_bounds = array<i64: 8, 128>}]} {
    %c0 = arith.constant 0 : index
    %c0_0 = arith.constant 0 : index
    %0 = vector.load %arg1[%c0, %c0_0] : memref<8x768xf32, #tpu.memory_space<vmem>>, vector<8x768xf32>
    %1 = arith.truncf %0 : vector<8x768xf32> to vector<8x768xbf16>
    %c0_1 = arith.constant 0 : index
    %c0_2 = arith.constant 0 : index
    %2 = vector.load %arg2[%c0_1, %c0_2] : memref<768x128xbf16, #tpu.memory_space<vmem>>, vector<768x128xbf16>
    %cst = arith.constant dense<0.000000e+00> : vector<8x128xf32>
    %3 = tpu.matmul %1, %2, %cst {dimension_numbers = #tpu.dot_dimension_numbers<[1], [0], [0], [1], [0, 0, 1, 1], [], []>} : vector<8x768xbf16>, vector<768x128xbf16>, vector<8x128xf32> -> vector<8x128xf32>
    %c0_3 = arith.constant 0 : index
    %c0_4 = arith.constant 0 : index
    %4 = vector.load %arg3[%c0_3, %c0_4] : memref<1x128xf32, #tpu.memory_space<vmem>>, vector<1x128xf32>
    %5 = vector.broadcast %4 : vector<1x128xf32> to vector<8x128xf32>
    %6 = arith.addf %3, %5 : vector<8x128xf32>
    %7 = arith.negf %6 : vector<8x128xf32>
    %8 = math.exp %7 : vector<8x128xf32>
    %cst_5 = arith.constant 1.000000e+00 : f32
    %9 = vector.broadcast %cst_5 : f32 to vector<8x128xf32>
    %10 = arith.addf %9, %8 : vector<8x128xf32>
    %11 = arith.divf %9, %10 : vector<8x128xf32>
    %12 = arith.truncf %11 : vector<8x128xf32> to vector<8x128xbf16>
    %c0_6 = arith.constant 0 : index
    %c0_7 = arith.constant 0 : index
    %13 = vector.load %arg4[%c0_6, %c0_7] : memref<128x128xbf16, #tpu.memory_space<vmem>>, vector<128x128xbf16>
    %cst_8 = arith.constant dense<0.000000e+00> : vector<8x128xf32>
    %14 = tpu.matmul %12, %13, %cst_8 {dimension_numbers = #tpu.dot_dimension_numbers<[1], [0], [0], [1], [0, 0, 1, 1], [], []>} : vector<8x128xbf16>, vector<128x128xbf16>, vector<8x128xf32> -> vector<8x128xf32>
    %c0_9 = arith.constant 0 : index
    %c0_10 = arith.constant 0 : index
    %15 = vector.load %arg5[%c0_9, %c0_10] : memref<1x128xf32, #tpu.memory_space<vmem>>, vector<1x128xf32>
    %16 = vector.broadcast %15 : vector<1x128xf32> to vector<8x128xf32>
    %17 = arith.addf %14, %16 : vector<8x128xf32>
    %c0_11 = arith.constant 0 : index
    %c0_12 = arith.constant 0 : index
    %18 = vector.load %arg6[%c0_11, %c0_12] : memref<8x128xf32, #tpu.memory_space<vmem>>, vector<8x128xf32>
    tpu.vector_store %arg6[%c0_11, %c0_12], %17 {strides = array<i32>} : memref<8x128xf32, #tpu.memory_space<vmem>>, vector<8x128xf32>,
    return
  }
  func.func @transform_0(%arg0: i32) -> (i32, i32) {
    %c0_i32 = arith.constant 0 : i32
    %c0_i32_0 = arith.constant 0 : i32
    return %arg0, %c0_i32 : i32, i32
  }
  func.func @transform_1(%arg0: i32) -> (i32, i32) {
    %c0_i32 = arith.constant 0 : i32
    %c0_i32_0 = arith.constant 0 : i32
    %c0_i32_1 = arith.constant 0 : i32
    return %c0_i32, %c0_i32_0 : i32, i32
  }
  func.func @transform_2(%arg0: i32) -> (i32, i32) {
    %c0_i32 = arith.constant 0 : i32
    %c0_i32_0 = arith.constant 0 : i32
    %c0_i32_1 = arith.constant 0 : i32
    return %c0_i32, %c0_i32_0 : i32, i32
  }
  func.func @transform_3(%arg0: i32) -> (i32, i32) {
    %c0_i32 = arith.constant 0 : i32
    %c0_i32_0 = arith.constant 0 : i32
    %c0_i32_1 = arith.constant 0 : i32
    return %c0_i32, %c0_i32_0 : i32, i32
  }
  func.func @transform_4(%arg0: i32) -> (i32, i32) {
    %c0_i32 = arith.constant 0 : i32
    %c0_i32_0 = arith.constant 0 : i32
    %c0_i32_1 = arith.constant 0 : i32
    return %c0_i32, %c0_i32_0 : i32, i32
  }
  func.func @transform_5(%arg0: i32) -> (i32, i32) {
    %c0_i32 = arith.constant 0 : i32
    %c0_i32_0 = arith.constant 0 : i32
    return %arg0, %c0_i32 : i32, i32
  }
}

</mosaic_0001>

<llo_original>
// kernel: bert_classifier_head.1
$region0: #{bert_classifier_head.1}
  #allocation0 [shape = 'u32[]', space=smem, size = 0x4, offset = 0x4, fixed_abs, tag = 'smem constant byte address 0x4 - core index']
  #allocation1 [shape = 'u32[144,128]{1,0:T(1,128)}', space=vmem, size = 0x12000, scoped, tag = 'internal scratch']
  %s0 = inlined_call_operand.vmem [shape: f32[16,6144], index: 0, kind: input, shape index: {}]
  %s1 = inlined_call_operand.vmem [shape: bf16[768,128], index: 1, kind: input, shape index: {}]
  %s2 = inlined_call_operand.vmem [shape: f32[1,128], index: 2, kind: input, shape index: {}]
  %s3 = inlined_call_operand.vmem [shape: bf16[128,128], index: 3, kind: input, shape index: {}]
  %s4 = inlined_call_operand.vmem [shape: f32[1,128], index: 4, kind: input, shape index: {}]
  %s5 = inlined_call_operand.vmem [shape: f32[16,128], index: 5, kind: output, shape index: {}]
  %s6 = sld [smem:[#allocation0]]
  $region53: #{bert_classifier_head.1} parent=0
    _
  %s8 = ssub.s32 1, %s6
  %s9 = scalar_select 0, %s8, %s6
  loop: start=0, step=1, limit=4
  $region2: #{bert_classifier_head.1} parent=0 // loop_pre_header
    _
  $region3: #{bert_classifier_head.1} parent=0 // loop_header
    %s11 = sphi 0, %s15
    %p12 = scmp.ge.s32.totalorder %s11, 4
    %s21 = sphi 0, %s23
    %s24 = sphi 0, %s21
    %s25 = sphi 0, %s24
    %s41 = sphi 0, %s25
    %s45 = sphi 0, %s45
    %s47 = sphi 0, %s45
    %s48 = sphi 0, %s47
    %s62 = sphi 0, %s48
    %s66 = sphi 0, %s66
    %s68 = sphi 0, %s66
    %s69 = sphi 0, %s68
    %s83 = sphi 0, %s69
    %s87 = sphi 0, %s87
    %s89 = sphi 0, %s87
    %s90 = sphi 0, %s89
    %s104 = sphi 0, %s90
    %s108 = sphi 0, %s108
    %s110 = sphi 0, %s108
    %s111 = sphi 0, %s110
    %s125 = sphi 0, %s111
    %s131 = sphi 0, %s133
    %s134 = sphi 0, %s131
    %s135 = sphi 0, %s134
    %s151 = sphi 0, %s135
  $region4: #{bert_classifier_head.1} parent=0 // loop_header_branch
    %14 = sbr.rel (%p12) target = $region8
  $region5: #{bert_classifier_head.1} parent=0 // loop_body
    %s16 = ssub.s32 %s11, 1
    %s17 = ssub.s32 %s11, 2
    %s18 = sadd.s32 %s11, 1
    %s19 = ssub.s32 %s11, %s18
    %p20 = scmp.eq.s32.totalorder %s19, 0
    %s22 = sadd.s32 %s21, 1
    %s23 = scalar_select %p20, %s21, %s22
    %p26 = pneg %p20
    %p27 = scmp.eq.s32.totalorder %s11, 1
    %p28 = por %p26, %p27
    %p29 = scmp.ne.s32.totalorder %s21, %s24
    %p30 = scmp.eq.s32.totalorder %s11, 0
    %p31 = por %p29, %p30
    %p32 = scmp.ne.s32.totalorder %s21, %s24
    %p33 = scmp.eq.s32.totalorder %s16, 1
    %p34 = por %p32, %p33
    %p35 = scmp.ne.s32.totalorder %s24, %s25
    %p36 = scmp.eq.s32.totalorder %s16, 0
    %p37 = por %p35, %p36
    %p38 = scmp.ne.s32.totalorder %s24, %s25
    %p39 = scmp.eq.s32.totalorder %s17, 1
    %p40 = por %p38, %p39
    %p42 = scmp.ne.s32.totalorder %s25, %s41
    %p43 = scmp.eq.s32.totalorder %s17, 0
    %p44 = por %p42, %p43
    %s46 = sadd.s32 %s45, 1
    %p49 = scmp.eq.s32.totalorder %s11, 1
    %p50 = scmp.ne.s32.totalorder %s45, %s47
    %p51 = scmp.eq.s32.totalorder %s11, 0
    %p52 = por %p50, %p51
    %p53 = scmp.ne.s32.totalorder %s45, %s47
    %p54 = scmp.eq.s32.totalorder %s16, 1
    %p55 = por %p53, %p54
    %p56 = scmp.ne.s32.totalorder %s47, %s48
    %p57 = scmp.eq.s32.totalorder %s16, 0
    %p58 = por %p56, %p57
    %p59 = scmp.ne.s32.totalorder %s47, %s48
    %p60 = scmp.eq.s32.totalorder %s17, 1
    %p61 = por %p59, %p60
    %p63 = scmp.ne.s32.totalorder %s48, %s62
    %p64 = scmp.eq.s32.totalorder %s17, 0
    %p65 = por %p63, %p64
    %s67 = sadd.s32 %s66, 1
    %p70 = scmp.eq.s32.totalorder %s11, 1
    %p71 = scmp.ne.s32.totalorder %s66, %s68
    %p72 = scmp.eq.s32.totalorder %s11, 0
    %p73 = por %p71, %p72
    %p74 = scmp.ne.s32.totalorder %s66, %s68
    %p75 = scmp.eq.s32.totalorder %s16, 1
    %p76 = por %p74, %p75
    %p77 = scmp.ne.s32.totalorder %s68, %s69
    %p78 = scmp.eq.s32.totalorder %s16, 0
    %p79 = por %p77, %p78
    %p80 = scmp.ne.s32.totalorder %s68, %s69
    %p81 = scmp.eq.s32.totalorder %s17, 1
    %p82 = por %p80, %p81
    %p84 = scmp.ne.s32.totalorder %s69, %s83
    %p85 = scmp.eq.s32.totalorder %s17, 0
    %p86 = por %p84, %p85
    %s88 = sadd.s32 %s87, 1
    %p91 = scmp.eq.s32.totalorder %s11, 1
    %p92 = scmp.ne.s32.totalorder %s87, %s89
    %p93 = scmp.eq.s32.totalorder %s11, 0
    %p94 = por %p92, %p93
    %p95 = scmp.ne.s32.totalorder %s87, %s89
    %p96 = scmp.eq.s32.totalorder %s16, 1
    %p97 = por %p95, %p96
    %p98 = scmp.ne.s32.totalorder %s89, %s90
    %p99 = scmp.eq.s32.totalorder %s16, 0
    %p100 = por %p98, %p99
    %p101 = scmp.ne.s32.totalorder %s89, %s90
    %p102 = scmp.eq.s32.totalorder %s17, 1
    %p103 = por %p101, %p102
    %p105 = scmp.ne.s32.totalorder %s90, %s104
    %p106 = scmp.eq.s32.totalorder %s17, 0
    %p107 = por %p105, %p106
    %s109 = sadd.s32 %s108, 1
    %p112 = scmp.eq.s32.totalorder %s11, 1
    %p113 = scmp.ne.s32.totalorder %s108, %s110
    %p114 = scmp.eq.s32.totalorder %s11, 0
    %p115 = por %p113, %p114
    %p116 = scmp.ne.s32.totalorder %s108, %s110
    %p117 = scmp.eq.s32.totalorder %s16, 1
    %p118 = por %p116, %p117
    %p119 = scmp.ne.s32.totalorder %s110, %s111
    %p120 = scmp.eq.s32.totalorder %s16, 0
    %p121 = por %p119, %p120
    %p122 = scmp.ne.s32.totalorder %s110, %s111
    %p123 = scmp.eq.s32.totalorder %s17, 1
    %p124 = por %p122, %p123
    %p126 = scmp.ne.s32.totalorder %s111, %s125
    %p127 = scmp.eq.s32.totalorder %s17, 0
    %p128 = por %p126, %p127
    %s129 = ssub.s32 %s11, %s18
    %p130 = scmp.eq.s32.totalorder %s129, 0
    %s132 = sadd.s32 %s131, 1
    %s133 = scalar_select %p130, %s131, %s132
    %p136 = pneg %p130
    %p137 = scmp.eq.s32.totalorder %s11, 1
    %p138 = por %p136, %p137
    %p139 = scmp.ne.s32.totalorder %s131, %s134
    %p140 = scmp.eq.s32.totalorder %s11, 0
    %p141 = por %p139, %p140
    %p142 = scmp.ne.s32.totalorder %s131, %s134
    %p143 = scmp.eq.s32.totalorder %s16, 1
    %p144 = por %p142, %p143
    %p145 = scmp.ne.s32.totalorder %s134, %s135
    %p146 = scmp.eq.s32.totalorder %s16, 0
    %p147 = por %p145, %p146
    %p148 = scmp.ne.s32.totalorder %s134, %s135
    %p149 = scmp.eq.s32.totalorder %s17, 1
    %p150 = por %p148, %p149
    %p152 = scmp.ne.s32.totalorder %s135, %s151
    %p153 = scmp.eq.s32.totalorder %s17, 0
    %p154 = por %p152, %p153
    %p155 = scmp.le.s32.totalorder 1, %s11
    %p156 = scmp.lt.s32.totalorder %s11, 3
    %p157 = pnand %p155, %p156
    %p158 = pneg %p157
    // Predicated region
    $region9: #{bert_classifier_head.1} parent=5 // pred_check
      _
    $region10: #{bert_classifier_head.1} parent=5 // pred_check_branch
      %160 = sbr.rel (%p157) target = $region12
    $region11: #{bert_classifier_head.1} parent=5 // pred_region
      %s161 = ssub.s32 %s11, 1
      // Predicated region
      $region13: #{bert_classifier_head.1} parent=11 // pred_check
        %p162 = pneg %p58
      $region14: #{bert_classifier_head.1} parent=11 // pred_check_branch
        %164 = sbr.rel (%p162) target = $region16
      $region15: #{bert_classifier_head.1} parent=11 // pred_region
        _
      $region16: #{bert_classifier_head.1} parent=11 // pred_fallthru
        _
      // Predicated region
      $region17: #{bert_classifier_head.1} parent=11 // pred_check
        %p165 = pneg %p79
      $region18: #{bert_classifier_head.1} parent=11 // pred_check_branch
        %167 = sbr.rel (%p165) target = $region20
      $region19: #{bert_classifier_head.1} parent=11 // pred_region
        _
      $region20: #{bert_classifier_head.1} parent=11 // pred_fallthru
        _
      // Predicated region
      $region21: #{bert_classifier_head.1} parent=11 // pred_check
        %p168 = pneg %p100
      $region22: #{bert_classifier_head.1} parent=11 // pred_check_branch
        %170 = sbr.rel (%p168) target = $region24
      $region23: #{bert_classifier_head.1} parent=11 // pred_region
        _
      $region24: #{bert_classifier_head.1} parent=11 // pred_fallthru
        _
      // Predicated region
      $region25: #{bert_classifier_head.1} parent=11 // pred_check
        %p171 = pneg %p121
      $region26: #{bert_classifier_head.1} parent=11 // pred_check_branch
        %173 = sbr.rel (%p171) target = $region28
      $region27: #{bert_classifier_head.1} parent=11 // pred_region
        _
      $region28: #{bert_classifier_head.1} parent=11 // pred_fallthru
        _
    $region12: #{bert_classifier_head.1} parent=5 // pred_fallthru
      _
    %p174 = scmp.lt.s32.totalorder %s11, 2
    // Predicated region
    $region29: #{bert_classifier_head.1} parent=5 // pred_check
      %p175 = pneg %p174
    $region30: #{bert_classifier_head.1} parent=5 // pred_check_branch
      %177 = sbr.rel (%p175) target = $region32
    $region31: #{bert_classifier_head.1} parent=5 // pred_region
      // Predicated region
      $region33: #{bert_classifier_head.1} parent=31 // pred_check
        %p178 = pneg %p31
      $region34: #{bert_classifier_head.1} parent=31 // pred_check_branch
        %180 = sbr.rel (%p178) target = $region36
      $region35: #{bert_classifier_head.1} parent=31 // pred_region
        %p181 = scmp.lt.s32.totalorder %s11, 1
        %s182 = scalar_select %p181, %s11, 1
        %s183 = smul.addr %s182, 48
        %s184 = smul.addr %s183, 8
        %s185 = scalar_lea.vmem %s0, %s184
      $region36: #{bert_classifier_head.1} parent=31 // pred_fallthru
        _
    $region32: #{bert_classifier_head.1} parent=5 // pred_fallthru
      _
    %p186 = scmp.le.s32.totalorder 1, %s11
    %p187 = scmp.lt.s32.totalorder %s11, 3
    %p188 = pnand %p186, %p187
    %p189 = pneg %p188
    // Predicated region
    $region37: #{bert_classifier_head.1} parent=5 // pred_check
      _
    $region38: #{bert_classifier_head.1} parent=5 // pred_check_branch
      %191 = sbr.rel (%p188) target = $region40
    $region39: #{bert_classifier_head.1} parent=5 // pred_region
      %s192 = ssub.s32 %s11, 1
      %p193 = scmp.lt.s32.totalorder %s16, 1
      %s194 = scalar_select %p193, %s16, 1
      %s195 = smul.addr %s194, 48
      %s196 = smul.addr %s195, 8
      %s197 = scalar_lea.vmem %s0, %s196
      %p198 = pneg %p37
      %p199 = pneg %p34
      %p200 = pneg %p58
      %p201 = pneg %p55
      %p202 = pneg %p79
      %p203 = pneg %p76
      %p204 = pneg %p100
      %p205 = pneg %p97
      %p206 = pneg %p121
      %p207 = pneg %p118
      %p208 = pneg %p147
      %p209 = pneg %p144
      %p210 = scmp.lt.s32.totalorder %s16, 1
      %s211 = scalar_select %p210, %s16, 1
      %s212 = smul.addr %s211, 8
      %s213 = scalar_lea.vmem %s5, %s212
      %p214 = scmp.lt.s32.totalorder %s16, 1
      %s215 = scalar_select %p214, %s16, 1
      %s216 = smul.addr %s215, 48
      %s217 = smul.addr %s216, 8
      %s218 = scalar_lea.vmem %s0, %s217
      %p219 = scmp.lt.s32.totalorder %s16, 1
      %s220 = scalar_select %p219, %s16, 1
      %s221 = smul.addr %s220, 8
      %s222 = scalar_lea.vmem %s5, %s221
      %v224 = vld [vmem:[%s218] sm:$0xff]
      %v225 = vld [vmem:[%s218 + $0x8] sm:$0xff]
      %v226 = vld [vmem:[%s218 + $0x10] sm:$0xff]
      %v227 = vld [vmem:[%s218 + $0x18] sm:$0xff]
      %v228 = vld [vmem:[%s218 + $0x20] sm:$0xff]
      %v229 = vld [vmem:[%s218 + $0x28] sm:$0xff]
      %v230 = vpack.c.bf16 %v224, %v224
      %v231 = vpack.c.bf16 %v225, %v225
      %v232 = vpack.c.bf16 %v226, %v226
      %v233 = vpack.c.bf16 %v227, %v227
      %v234 = vpack.c.bf16 %v228, %v228
      %v235 = vpack.c.bf16 %v229, %v229
      %v236 = vld [vmem:[%s1] sm:$0xf]
      %v237 = vld [vmem:[%s1 + $0x4] sm:$0xf]
      %v238 = vld [vmem:[%s1 + $0x8] sm:$0xf]
      %v239 = vld [vmem:[%s1 + $0xc] sm:$0xf]
      %v240 = vld [vmem:[%s1 + $0x10] sm:$0xf]
      %v241 = vld [vmem:[%s1 + $0x14] sm:$0xf]
      %v242 = vld [vmem:[%s1 + $0x18] sm:$0xf]
      %v243 = vld [vmem:[%s1 + $0x1c] sm:$0xf]
      %v244 = vld [vmem:[%s1 + $0x20] sm:$0xf]
      %v245 = vld [vmem:[%s1 + $0x24] sm:$0xf]
      %v246 = vld [vmem:[%s1 + $0x28] sm:$0xf]
      %v247 = vld [vmem:[%s1 + $0x2c] sm:$0xf]
      %v248 = vld [vmem:[%s1 + $0x30] sm:$0xf]
      %v249 = vld [vmem:[%s1 + $0x34] sm:$0xf]
      %v250 = vld [vmem:[%s1 + $0x38] sm:$0xf]
      %v251 = vld [vmem:[%s1 + $0x3c] sm:$0xf]
      %v252 = vld [vmem:[%s1 + $0x40] sm:$0xf]
      %v253 = vld [vmem:[%s1 + $0x44] sm:$0xf]
      %v254 = vld [vmem:[%s1 + $0x48] sm:$0xf]
      %v255 = vld [vmem:[%s1 + $0x4c] sm:$0xf]
      %v256 = vld [vmem:[%s1 + $0x50] sm:$0xf]
      %v257 = vld [vmem:[%s1 + $0x54] sm:$0xf]
      %v258 = vld [vmem:[%s1 + $0x58] sm:$0xf]
      %v259 = vld [vmem:[%s1 + $0x5c] sm:$0xf]
      %v260 = vld [vmem:[%s1 + $0x60] sm:$0xf]
      %v261 = vld [vmem:[%s1 + $0x64] sm:$0xf]
      %v262 = vld [vmem:[%s1 + $0x68] sm:$0xf]
      %v263 = vld [vmem:[%s1 + $0x6c] sm:$0xf]
      %v264 = vld [vmem:[%s1 + $0x70] sm:$0xf]
      %v265 = vld [vmem:[%s1 + $0x74] sm:$0xf]
      %v266 = vld [vmem:[%s1 + $0x78] sm:$0xf]
      %v267 = vld [vmem:[%s1 + $0x7c] sm:$0xf]
      %v268 = vld [vmem:[%s1 + $0x80] sm:$0xf]
      %v269 = vld [vmem:[%s1 + $0x84] sm:$0xf]
      %v270 = vld [vmem:[%s1 + $0x88] sm:$0xf]
      %v271 = vld [vmem:[%s1 + $0x8c] sm:$0xf]
      %v272 = vld [vmem:[%s1 + $0x90] sm:$0xf]
      %v273 = vld [vmem:[%s1 + $0x94] sm:$0xf]
      %v274 = vld [vmem:[%s1 + $0x98] sm:$0xf]
      %v275 = vld [vmem:[%s1 + $0x9c] sm:$0xf]
      %v276 = vld [vmem:[%s1 + $0xa0] sm:$0xf]
      %v277 = vld [vmem:[%s1 + $0xa4] sm:$0xf]
      %v278 = vld [vmem:[%s1 + $0xa8] sm:$0xf]
      %v279 = vld [vmem:[%s1 + $0xac] sm:$0xf]
      %v280 = vld [vmem:[%s1 + $0xb0] sm:$0xf]
      %v281 = vld [vmem:[%s1 + $0xb4] sm:$0xf]
      %v282 = vld [vmem:[%s1 + $0xb8] sm:$0xf]
      %v283 = vld [vmem:[%s1 + $0xbc] sm:$0xf]
      %v284 = vld [vmem:[%s1 + $0xc0] sm:$0xf]
      %v285 = vld [vmem:[%s1 + $0xc4] sm:$0xf]
      %v286 = vld [vmem:[%s1 + $0xc8] sm:$0xf]
      %v287 = vld [vmem:[%s1 + $0xcc] sm:$0xf]
      %v288 = vld [vmem:[%s1 + $0xd0] sm:$0xf]
      %v289 = vld [vmem:[%s1 + $0xd4] sm:$0xf]
      %v290 = vld [vmem:[%s1 + $0xd8] sm:$0xf]
      %v291 = vld [vmem:[%s1 + $0xdc] sm:$0xf]
      %v292 = vld [vmem:[%s1 + $0xe0] sm:$0xf]
      %v293 = vld [vmem:[%s1 + $0xe4] sm:$0xf]
      %v294 = vld [vmem:[%s1 + $0xe8] sm:$0xf]
      %v295 = vld [vmem:[%s1 + $0xec] sm:$0xf]
      %v296 = vld [vmem:[%s1 + $0xf0] sm:$0xf]
      %v297 = vld [vmem:[%s1 + $0xf4] sm:$0xf]
      %v298 = vld [vmem:[%s1 + $0xf8] sm:$0xf]
      %v299 = vld [vmem:[%s1 + $0xfc] sm:$0xf]
      %v300 = vld [vmem:[%s1 + $0x100] sm:$0xf]
      %v301 = vld [vmem:[%s1 + $0x104] sm:$0xf]
      %v302 = vld [vmem:[%s1 + $0x108] sm:$0xf]
      %v303 = vld [vmem:[%s1 + $0x10c] sm:$0xf]
      %v304 = vld [vmem:[%s1 + $0x110] sm:$0xf]
      %v305 = vld [vmem:[%s1 + $0x114] sm:$0xf]
      %v306 = vld [vmem:[%s1 + $0x118] sm:$0xf]
      %v307 = vld [vmem:[%s1 + $0x11c] sm:$0xf]
      %v308 = vld [vmem:[%s1 + $0x120] sm:$0xf]
      %v309 = vld [vmem:[%s1 + $0x124] sm:$0xf]
      %v310 = vld [vmem:[%s1 + $0x128] sm:$0xf]
      %v311 = vld [vmem:[%s1 + $0x12c] sm:$0xf]
      %v312 = vld [vmem:[%s1 + $0x130] sm:$0xf]
      %v313 = vld [vmem:[%s1 + $0x134] sm:$0xf]
      %v314 = vld [vmem:[%s1 + $0x138] sm:$0xf]
      %v315 = vld [vmem:[%s1 + $0x13c] sm:$0xf]
      %v316 = vld [vmem:[%s1 + $0x140] sm:$0xf]
      %v317 = vld [vmem:[%s1 + $0x144] sm:$0xf]
      %v318 = vld [vmem:[%s1 + $0x148] sm:$0xf]
      %v319 = vld [vmem:[%s1 + $0x14c] sm:$0xf]
      %v320 = vld [vmem:[%s1 + $0x150] sm:$0xf]
      %v321 = vld [vmem:[%s1 + $0x154] sm:$0xf]
      %v322 = vld [vmem:[%s1 + $0x158] sm:$0xf]
      %v323 = vld [vmem:[%s1 + $0x15c] sm:$0xf]
      %v324 = vld [vmem:[%s1 + $0x160] sm:$0xf]
      %v325 = vld [vmem:[%s1 + $0x164] sm:$0xf]
      %v326 = vld [vmem:[%s1 + $0x168] sm:$0xf]
      %v327 = vld [vmem:[%s1 + $0x16c] sm:$0xf]
      %v328 = vld [vmem:[%s1 + $0x170] sm:$0xf]
      %v329 = vld [vmem:[%s1 + $0x174] sm:$0xf]
      %v330 = vld [vmem:[%s1 + $0x178] sm:$0xf]
      %v331 = vld [vmem:[%s1 + $0x17c] sm:$0xf]
      %v332 = vld [vmem:[%s2] sm:$0x1]
      %v334 = vlaneseq
      %v335 = vshrl.u32 %v334, 7
      %v336 = vsub.s32 0, %v335
      %v337 = vrot.slane %v332, %v336
      %v435 = vunpack.c.l.b16 %v236
      %v436 = vunpack.c.l.b16 %v237
      %v437 = vunpack.c.l.b16 %v238
      %v438 = vunpack.c.l.b16 %v239
      %v439 = vunpack.c.l.b16 %v240
      %v440 = vunpack.c.l.b16 %v241
      %v441 = vunpack.c.l.b16 %v242
      %v442 = vunpack.c.l.b16 %v243
      %v443 = vunpack.c.l.b16 %v244
      %v444 = vunpack.c.l.b16 %v245
      %v445 = vunpack.c.l.b16 %v246
      %v446 = vunpack.c.l.b16 %v247
      %v447 = vunpack.c.l.b16 %v248
      %v448 = vunpack.c.l.b16 %v249
      %v449 = vunpack.c.l.b16 %v250
      %v450 = vunpack.c.l.b16 %v251
      %v451 = vunpack.c.l.b16 %v252
      %v452 = vunpack.c.l.b16 %v253
      %v453 = vunpack.c.l.b16 %v254
      %v454 = vunpack.c.l.b16 %v255
      %v455 = vunpack.c.l.b16 %v256
      %v456 = vunpack.c.l.b16 %v257
      %v457 = vunpack.c.l.b16 %v258
      %v458 = vunpack.c.l.b16 %v259
      %v459 = vunpack.c.l.b16 %v260
      %v460 = vunpack.c.l.b16 %v261
      %v461 = vunpack.c.l.b16 %v262
      %v462 = vunpack.c.l.b16 %v263
      %v463 = vunpack.c.l.b16 %v264
      %v464 = vunpack.c.l.b16 %v265
      %v465 = vunpack.c.l.b16 %v266
      %v466 = vunpack.c.l.b16 %v267
      %v467 = vunpack.c.l.b16 %v268
      %v468 = vunpack.c.l.b16 %v269
      %v469 = vunpack.c.l.b16 %v270
      %v470 = vunpack.c.l.b16 %v271
      %v471 = vunpack.c.l.b16 %v272
      %v472 = vunpack.c.l.b16 %v273
      %v473 = vunpack.c.l.b16 %v274
      %v474 = vunpack.c.l.b16 %v275
      %v475 = vunpack.c.l.b16 %v276
      %v476 = vunpack.c.l.b16 %v277
      %v477 = vunpack.c.l.b16 %v278
      %v478 = vunpack.c.l.b16 %v279
      %v479 = vunpack.c.l.b16 %v280
      %v480 = vunpack.c.l.b16 %v281
      %v481 = vunpack.c.l.b16 %v282
      %v482 = vunpack.c.l.b16 %v283
      %v483 = vunpack.c.l.b16 %v284
      %v484 = vunpack.c.l.b16 %v285
      %v485 = vunpack.c.l.b16 %v286
      %v486 = vunpack.c.l.b16 %v287
      %v487 = vunpack.c.l.b16 %v288
      %v488 = vunpack.c.l.b16 %v289
      %v489 = vunpack.c.l.b16 %v290
      %v490 = vunpack.c.l.b16 %v291
      %v491 = vunpack.c.l.b16 %v292
      %v492 = vunpack.c.l.b16 %v293
      %v493 = vunpack.c.l.b16 %v294
      %v494 = vunpack.c.l.b16 %v295
      %v495 = vunpack.c.l.b16 %v296
      %v496 = vunpack.c.l.b16 %v297
      %v497 = vunpack.c.l.b16 %v298
      %v498 = vunpack.c.l.b16 %v299
      %v499 = vunpack.c.l.b16 %v300
      %v500 = vunpack.c.l.b16 %v301
      %v501 = vunpack.c.l.b16 %v302
      %v502 = vunpack.c.l.b16 %v303
      %v503 = vunpack.c.l.b16 %v304
      %v504 = vunpack.c.l.b16 %v305
      %v505 = vunpack.c.l.b16 %v306
      %v506 = vunpack.c.l.b16 %v307
      %v507 = vunpack.c.l.b16 %v308
      %v508 = vunpack.c.l.b16 %v309
      %v509 = vunpack.c.l.b16 %v310
      %v510 = vunpack.c.l.b16 %v311
      %v511 = vunpack.c.l.b16 %v312
      %v512 = vunpack.c.l.b16 %v313
      %v513 = vunpack.c.l.b16 %v314
      %v514 = vunpack.c.l.b16 %v315
      %v515 = vunpack.c.l.b16 %v316
      %v516 = vunpack.c.l.b16 %v317
      %v517 = vunpack.c.l.b16 %v318
      %v518 = vunpack.c.l.b16 %v319
      %v519 = vunpack.c.l.b16 %v320
      %v520 = vunpack.c.l.b16 %v321
      %v521 = vunpack.c.l.b16 %v322
      %v522 = vunpack.c.l.b16 %v323
      %v523 = vunpack.c.l.b16 %v324
      %v524 = vunpack.c.l.b16 %v325
      %v525 = vunpack.c.l.b16 %v326
      %v526 = vunpack.c.l.b16 %v327
      %v527 = vunpack.c.l.b16 %v328
      %v528 = vunpack.c.l.b16 %v329
      %v529 = vunpack.c.l.b16 %v330
      %v530 = vunpack.c.l.b16 %v331
      %v531 = vpack.c.b16 %v436, %v435
      %v532 = vpack.c.b16 %v438, %v437
      %v533 = vpack.c.b16 %v440, %v439
      %v534 = vpack.c.b16 %v442, %v441
      %v535 = vpack.c.b16 %v444, %v443
      %v536 = vpack.c.b16 %v446, %v445
      %v537 = vpack.c.b16 %v448, %v447
      %v538 = vpack.c.b16 %v450, %v449
      %v539 = vpack.c.b16 %v452, %v451
      %v540 = vpack.c.b16 %v454, %v453
      %v541 = vpack.c.b16 %v456, %v455
      %v542 = vpack.c.b16 %v458, %v457
      %v543 = vpack.c.b16 %v460, %v459
      %v544 = vpack.c.b16 %v462, %v461
      %v545 = vpack.c.b16 %v464, %v463
      %v546 = vpack.c.b16 %v466, %v465
      %v547 = vpack.c.b16 %v468, %v467
      %v548 = vpack.c.b16 %v470, %v469
      %v549 = vpack.c.b16 %v472, %v471
      %v550 = vpack.c.b16 %v474, %v473
      %v551 = vpack.c.b16 %v476, %v475
      %v552 = vpack.c.b16 %v478, %v477
      %v553 = vpack.c.b16 %v480, %v479
      %v554 = vpack.c.b16 %v482, %v481
      %v555 = vpack.c.b16 %v484, %v483
      %v556 = vpack.c.b16 %v486, %v485
      %v557 = vpack.c.b16 %v488, %v487
      %v558 = vpack.c.b16 %v490, %v489
      %v559 = vpack.c.b16 %v492, %v491
      %v560 = vpack.c.b16 %v494, %v493
      %v561 = vpack.c.b16 %v496, %v495
      %v562 = vpack.c.b16 %v498, %v497
      %v563 = vpack.c.b16 %v500, %v499
      %v564 = vpack.c.b16 %v502, %v501
      %v565 = vpack.c.b16 %v504, %v503
      %v566 = vpack.c.b16 %v506, %v505
      %v567 = vpack.c.b16 %v508, %v507
      %v568 = vpack.c.b16 %v510, %v509
      %v569 = vpack.c.b16 %v512, %v511
      %v570 = vpack.c.b16 %v514, %v513
      %v571 = vpack.c.b16 %v516, %v515
      %v572 = vpack.c.b16 %v518, %v517
      %v573 = vpack.c.b16 %v520, %v519
      %v574 = vpack.c.b16 %v522, %v521
      %v575 = vpack.c.b16 %v524, %v523
      %v576 = vpack.c.b16 %v526, %v525
      %v577 = vpack.c.b16 %v528, %v527
      %v578 = vpack.c.b16 %v530, %v529
      %627 = vmatprep.subr.bf16.mxu0 0
      %628 = vmatpush1.bf16.msra.mxu0 %v531
      %629 = vmatprep.subr.bf16.mxu0 0
      %630 = vmatpush1.bf16.msra.mxu0 %v532
      %631 = vmatprep.subr.bf16.mxu0 0
      %632 = vmatpush1.bf16.msra.mxu0 %v533
      %633 = vmatprep.subr.bf16.mxu0 0
      %634 = vmatpush1.bf16.msra.mxu0 %v534
      %635 = vmatprep.subr.bf16.mxu0 0
      %636 = vmatpush1.bf16.msra.mxu0 %v535
      %637 = vmatprep.subr.bf16.mxu0 0
      %638 = vmatpush1.bf16.msra.mxu0 %v536
      %639 = vmatprep.subr.bf16.mxu0 0
      %640 = vmatpush1.bf16.msra.mxu0 %v537
      %641 = vmatprep.subr.bf16.mxu0 0
      %642 = vmatpush1.bf16.msra.mxu0 %v538
      %643 = vmatprep.subr.bf16.mxu0 0
      %644 = vmatpush1.bf16.msra.mxu0 %v539
      %645 = vmatprep.subr.bf16.mxu0 0
      %646 = vmatpush1.bf16.msra.mxu0 %v540
      %647 = vmatprep.subr.bf16.mxu0 0
      %648 = vmatpush1.bf16.msra.mxu0 %v541
      %649 = vmatprep.subr.bf16.mxu0 0
      %650 = vmatpush1.bf16.msra.mxu0 %v542
      %651 = vmatprep.subr.bf16.mxu0 0
      %652 = vmatpush1.bf16.msra.mxu0 %v543
      %653 = vmatprep.subr.bf16.mxu0 0
      %654 = vmatpush1.bf16.msra.mxu0 %v544
      %655 = vmatprep.subr.bf16.mxu0 0
      %656 = vmatpush1.bf16.msra.mxu0 %v545
      %657 = vmatprep.subr.bf16.mxu0 0
      %658 = vmatpush1.bf16.msra.mxu0 %v546
      %659 = vmatprep.mubr.bf16.mxu0 %v231
      %660 = vmatmul.mubr.bf16.gmra.mrb[0].mxu0 %v230
      %v661 = vpop.f32.mrb[0].mxu0
      %v662 = vadd.f32 %v337, %v661
      %v663 = vpop.f32.mrb[0].mxu0
      %v664 = vpop.f32.mrb[0].mxu0
      %v665 = vpop.f32.mrb[0].mxu0
      %666 = vdwg.mxu0
      %667 = vmatprep.subr.bf16.mxu0 0
      %668 = vmatpush1.bf16.msra.mxu0 %v547
      %669 = vmatprep.subr.bf16.mxu0 0
      %670 = vmatpush1.bf16.msra.mxu0 %v548
      %671 = vmatprep.subr.bf16.mxu0 0
      %672 = vmatpush1.bf16.msra.mxu0 %v549
      %673 = vmatprep.subr.bf16.mxu0 0
      %674 = vmatpush1.bf16.msra.mxu0 %v550
      %675 = vmatprep.subr.bf16.mxu0 0
      %676 = vmatpush1.bf16.msra.mxu0 %v551
      %677 = vmatprep.subr.bf16.mxu0 0
      %678 = vmatpush1.bf16.msra.mxu0 %v552
      %679 = vmatprep.subr.bf16.mxu0 0
      %680 = vmatpush1.bf16.msra.mxu0 %v553
      %681 = vmatprep.subr.bf16.mxu0 0
      %682 = vmatpush1.bf16.msra.mxu0 %v554
      %683 = vmatprep.subr.bf16.mxu0 0
      %684 = vmatpush1.bf16.msra.mxu0 %v555
      %685 = vmatprep.subr.bf16.mxu0 0
      %686 = vmatpush1.bf16.msra.mxu0 %v556
      %687 = vmatprep.subr.bf16.mxu0 0
      %688 = vmatpush1.bf16.msra.mxu0 %v557
      %689 = vmatprep.subr.bf16.mxu0 0
      %690 = vmatpush1.bf16.msra.mxu0 %v558
      %691 = vmatprep.subr.bf16.mxu0 0
      %692 = vmatpush1.bf16.msra.mxu0 %v559
      %693 = vmatprep.subr.bf16.mxu0 0
      %694 = vmatpush1.bf16.msra.mxu0 %v560
      %695 = vmatprep.subr.bf16.mxu0 0
      %696 = vmatpush1.bf16.msra.mxu0 %v561
      %697 = vmatprep.subr.bf16.mxu0 0
      %698 = vmatpush1.bf16.msra.mxu0 %v562
      %699 = vmatprep.mubr.bf16.mxu0 %v233
      %700 = vmatmul.mubr.bf16.gmra.mrb[0].mxu0 %v232
      %v701 = vpop.f32.mrb[0].mxu0
      %v702 = vadd.f32 %v662, %v701
      %v703 = vpop.f32.mrb[0].mxu0
      %v704 = vpop.f32.mrb[0].mxu0
      %v705 = vpop.f32.mrb[0].mxu0
      %706 = vdwg.mxu0
      %707 = vmatprep.subr.bf16.mxu0 0
      %708 = vmatpush1.bf16.msra.mxu0 %v563
      %709 = vmatprep.subr.bf16.mxu0 0
      %710 = vmatpush1.bf16.msra.mxu0 %v564
      %711 = vmatprep.subr.bf16.mxu0 0
      %712 = vmatpush1.bf16.msra.mxu0 %v565
      %713 = vmatprep.subr.bf16.mxu0 0
      %714 = vmatpush1.bf16.msra.mxu0 %v566
      %715 = vmatprep.subr.bf16.mxu0 0
      %716 = vmatpush1.bf16.msra.mxu0 %v567
      %717 = vmatprep.subr.bf16.mxu0 0
      %718 = vmatpush1.bf16.msra.mxu0 %v568
      %719 = vmatprep.subr.bf16.mxu0 0
      %720 = vmatpush1.bf16.msra.mxu0 %v569
      %721 = vmatprep.subr.bf16.mxu0 0
      %722 = vmatpush1.bf16.msra.mxu0 %v570
      %723 = vmatprep.subr.bf16.mxu0 0
      %724 = vmatpush1.bf16.msra.mxu0 %v571
      %725 = vmatprep.subr.bf16.mxu0 0
      %726 = vmatpush1.bf16.msra.mxu0 %v572
      %727 = vmatprep.subr.bf16.mxu0 0
      %728 = vmatpush1.bf16.msra.mxu0 %v573
      %729 = vmatprep.subr.bf16.mxu0 0
      %730 = vmatpush1.bf16.msra.mxu0 %v574
      %731 = vmatprep.subr.bf16.mxu0 0
      %732 = vmatpush1.bf16.msra.mxu0 %v575
      %733 = vmatprep.subr.bf16.mxu0 0
      %734 = vmatpush1.bf16.msra.mxu0 %v576
      %735 = vmatprep.subr.bf16.mxu0 0
      %736 = vmatpush1.bf16.msra.mxu0 %v577
      %737 = vmatprep.subr.bf16.mxu0 0
      %738 = vmatpush1.bf16.msra.mxu0 %v578
      %739 = vmatprep.mubr.bf16.mxu0 %v235
      %740 = vmatmul.mubr.bf16.gmra.mrb[0].mxu0 %v234
      %v741 = vpop.f32.mrb[0].mxu0
      %v742 = vadd.f32 %v702, %v741
      %v743 = vpop.f32.mrb[0].mxu0
      %v744 = vpop.f32.mrb[0].mxu0
      %v745 = vpop.f32.mrb[0].mxu0
      %746 = vdwg.mxu0
      %v747 = vxor.u32 %v742, 2147483648
      %v748 = vmul.f32 %v747, 1.442695
      %v749 = vpow.pop %v748
      %v750 = vadd.f32 %v749, 1.0
      %v751 = vrcp.pop %v750
      %v752 = vmul.f32 1.0, %v751
      %v753 = vpack.c.bf16 %v752, %v752
      %v754 = vld [vmem:[%s3] sm:$0xf]
      %v755 = vld [vmem:[%s3 + $0x4] sm:$0xf]
      %v756 = vld [vmem:[%s3 + $0x8] sm:$0xf]
      %v757 = vld [vmem:[%s3 + $0xc] sm:$0xf]
      %v758 = vld [vmem:[%s3 + $0x10] sm:$0xf]
      %v759 = vld [vmem:[%s3 + $0x14] sm:$0xf]
      %v760 = vld [vmem:[%s3 + $0x18] sm:$0xf]
      %v761 = vld [vmem:[%s3 + $0x1c] sm:$0xf]
      %v762 = vld [vmem:[%s3 + $0x20] sm:$0xf]
      %v763 = vld [vmem:[%s3 + $0x24] sm:$0xf]
      %v764 = vld [vmem:[%s3 + $0x28] sm:$0xf]
      %v765 = vld [vmem:[%s3 + $0x2c] sm:$0xf]
      %v766 = vld [vmem:[%s3 + $0x30] sm:$0xf]
      %v767 = vld [vmem:[%s3 + $0x34] sm:$0xf]
      %v768 = vld [vmem:[%s3 + $0x38] sm:$0xf]
      %v769 = vld [vmem:[%s3 + $0x3c] sm:$0xf]
      %v770 = vld [vmem:[%s4] sm:$0x1]
      %v772 = vlaneseq
      %v773 = vshrl.u32 %v772, 7
      %v774 = vsub.s32 0, %v773
      %v775 = vrot.slane %v770, %v774
      %v793 = vunpack.c.l.b16 %v754
      %v794 = vunpack.c.l.b16 %v755
      %v795 = vunpack.c.l.b16 %v756
      %v796 = vunpack.c.l.b16 %v757
      %v797 = vunpack.c.l.b16 %v758
      %v798 = vunpack.c.l.b16 %v759
      %v799 = vunpack.c.l.b16 %v760
      %v800 = vunpack.c.l.b16 %v761
      %v801 = vunpack.c.l.b16 %v762
      %v802 = vunpack.c.l.b16 %v763
      %v803 = vunpack.c.l.b16 %v764
      %v804 = vunpack.c.l.b16 %v765
      %v805 = vunpack.c.l.b16 %v766
      %v806 = vunpack.c.l.b16 %v767
      %v807 = vunpack.c.l.b16 %v768
      %v808 = vunpack.c.l.b16 %v769
      %v809 = vpack.c.b16 %v794, %v793
      %v810 = vpack.c.b16 %v796, %v795
      %v811 = vpack.c.b16 %v798, %v797
      %v812 = vpack.c.b16 %v800, %v799
      %v813 = vpack.c.b16 %v802, %v801
      %v814 = vpack.c.b16 %v804, %v803
      %v815 = vpack.c.b16 %v806, %v805
      %v816 = vpack.c.b16 %v808, %v807
      %825 = vmatprep.subr.bf16.mxu0 0
      %826 = vmatpush1.bf16.msra.mxu0 %v809
      %827 = vmatprep.subr.bf16.mxu0 0
      %828 = vmatpush1.bf16.msra.mxu0 %v810
      %829 = vmatprep.subr.bf16.mxu0 0
      %830 = vmatpush1.bf16.msra.mxu0 %v811
      %831 = vmatprep.subr.bf16.mxu0 0
      %832 = vmatpush1.bf16.msra.mxu0 %v812
      %833 = vmatprep.subr.bf16.mxu0 0
      %834 = vmatpush1.bf16.msra.mxu0 %v813
      %835 = vmatprep.subr.bf16.mxu0 0
      %836 = vmatpush1.bf16.msra.mxu0 %v814
      %837 = vmatprep.subr.bf16.mxu0 0
      %838 = vmatpush1.bf16.msra.mxu0 %v815
      %839 = vmatprep.subr.bf16.mxu0 0
      %840 = vmatpush1.bf16.msra.mxu0 %v816
      %841 = vmatprep.subr.bf16.mxu0 0
      %842 = vmatpush1.bf16.msra.mxu0 0
      %843 = vmatprep.subr.bf16.mxu0 0
      %844 = vmatpush1.bf16.msra.mxu0 0
      %845 = vmatprep.subr.bf16.mxu0 0
      %846 = vmatpush1.bf16.msra.mxu0 0
      %847 = vmatprep.subr.bf16.mxu0 0
      %848 = vmatpush1.bf16.msra.mxu0 0
      %849 = vmatprep.subr.bf16.mxu0 0
      %850 = vmatpush1.bf16.msra.mxu0 0
      %851 = vmatprep.subr.bf16.mxu0 0
      %852 = vmatpush1.bf16.msra.mxu0 0
      %853 = vmatprep.subr.bf16.mxu0 0
      %854 = vmatpush1.bf16.msra.mxu0 0
      %855 = vmatprep.subr.bf16.mxu0 0
      %856 = vmatpush1.bf16.msra.mxu0 0
      %857 = vmatprep.mubr.bf16.mxu0 0
      %858 = vmatmul.mubr.bf16.gmra.mrb[0].mxu0 %v753
      %v859 = vpop.f32.mrb[0].mxu0
      %v860 = vadd.f32 %v775, %v859
      %v861 = vpop.f32.mrb[0].mxu0
      %v862 = vpop.f32.mrb[0].mxu0
      %v863 = vpop.f32.mrb[0].mxu0
      %864 = vdwg.mxu0
      %865 = vst [vmem:[%s222] sm:$0xff] %v860
      %p866 = scmp.lt.s32.totalorder %s16, 1
      %s867 = scalar_select %p866, %s16, 1
      %s868 = smul.addr %s867, 8
      %s869 = scalar_lea.vmem %s5, %s868
      // Predicated region
      $region41: #{bert_classifier_head.1} parent=39 // pred_check
        %p870 = pneg %p144
      $region42: #{bert_classifier_head.1} parent=39 // pred_check_branch
        %872 = sbr.rel (%p870) target = $region44
      $region43: #{bert_classifier_head.1} parent=39 // pred_region
        _
      $region44: #{bert_classifier_head.1} parent=39 // pred_fallthru
        _
    $region40: #{bert_classifier_head.1} parent=5 // pred_fallthru
      _
    %p873 = scmp.le.s32.totalorder 2, %s11
    // Predicated region
    $region45: #{bert_classifier_head.1} parent=5 // pred_check
      %p874 = pneg %p873
    $region46: #{bert_classifier_head.1} parent=5 // pred_check_branch
      %876 = sbr.rel (%p874) target = $region48
    $region47: #{bert_classifier_head.1} parent=5 // pred_region
      %s877 = ssub.s32 %s11, 2
      // Predicated region
      $region49: #{bert_classifier_head.1} parent=47 // pred_check
        %p878 = pneg %p150
      $region50: #{bert_classifier_head.1} parent=47 // pred_check_branch
        %880 = sbr.rel (%p878) target = $region52
      $region51: #{bert_classifier_head.1} parent=47 // pred_region
        %p881 = scmp.lt.s32.totalorder %s17, 1
        %s882 = scalar_select %p881, %s17, 1
        %s883 = smul.addr %s882, 8
        %s884 = scalar_lea.vmem %s5, %s883
      $region52: #{bert_classifier_head.1} parent=47 // pred_fallthru
        _
    $region48: #{bert_classifier_head.1} parent=5 // pred_fallthru
      _
  $region6: #{bert_classifier_head.1} parent=0 // loop_footer
    %s15 = sadd.s32 1, %s11
  $region7: #{bert_classifier_head.1} parent=0 // loop_footer_branch
    %10 = sbr.rel target = $region3
  $region8: #{bert_classifier_head.1} parent=0 // loop_exit
    _

</llo_original>
